<compile_context>
chip_gen: v7x
topology: tpu7x:2x2x1
jax: 0.10.0
libtpu: 0.0.40
codegen_flags: <defaults>
</compile_context>

<pallas_src>
import functools

import jax
import jax.numpy as jnp
from jax.experimental import pallas as pl
from jax.experimental.pallas import tpu as pltpu

_LANE = 128
_SUBLANE = 8
_TB_MAX = 512  # batch tile: few grid steps, still tiny per-step VMEM (~0.6 MiB dbl-buffered)


def _round_up(x: int, m: int) -> int:
    return ((x + m - 1) // m) * m


def dqn_kernel(x_ref, w1_ref, b1_ref, w2_ref, b2_ref, w3_ref, b3_ref, o_ref):
    """Fused 3-layer MLP: relu(relu(x@W1+b1)@W2+b2)@W3+b3 for one batch tile."""
    x = x_ref[...]      # (TB, n_obs)
    w1 = w1_ref[...]    # (n_obs, H)

    # Layer 1 on the VPU: K = n_obs (2) is far too small to be worth an MXU pass.
    # h1 = sum_k x[:, k] * W1[k, :] + b1  (static, tiny unrolled loop -> broadcast FMAs)
    h1 = b1_ref[...]    # (1, H), broadcasts up on first add
    for k in range(w1.shape[0]):
        h1 = h1 + x[:, k:k + 1] * w1[k:k + 1, :]
    h1 = jnp.maximum(h1, 0.0)

    # Layers 2 and 3 on the MXU with f32 accumulation.
    h2 = jnp.dot(h1, w2_ref[...], preferred_element_type=jnp.float32) + b2_ref[...]
    h2 = jnp.maximum(h2, 0.0)
    out = jnp.dot(h2, w3_ref[...], preferred_element_type=jnp.float32) + b3_ref[...]

    o_ref[...] = out.astype(o_ref.dtype)


def pad_params(w1, b1, w2, b2, w3, b3):
    """One-time (init-time) param prep. Only the output feature dim is padded to 128.

    If the params are updated by an optimizer, re-run this after each update (or keep
    the padded region zero) so the padded lanes stay zero.
    """
    H = w2.shape[0]
    n_act = w3.shape[1]
    act_p = _round_up(n_act, _LANE)
    w3p = jnp.zeros((H, act_p), jnp.float32).at[:, :n_act].set(w3)
    b3p = jnp.zeros((1, act_p), jnp.float32).at[0, :n_act].set(b3)
    return (
        w1.astype(jnp.float32),
        b1.reshape(1, -1).astype(jnp.float32),
        w2.astype(jnp.float32),
        b2.reshape(1, -1).astype(jnp.float32),
        w3p,
        b3p,
    )


@functools.partial(jax.jit, static_argnames=("n_actions",))
def dqn_forward(x, w1, b1, w2, b2, w3p, b3p, *, n_actions):
    """x: (B, n_obs) f32; params as produced by pad_params. Returns (B, n_actions) f32."""
    B, n_obs = x.shape
    H = w1.shape[1]
    act_p = w3p.shape[1]

    tb = min(_TB_MAX, _round_up(B, _SUBLANE))
    bp = _round_up(B, tb)
    if bp != B:
        # Tiny per-call batch pad (rows of zeros); weights/biases are pre-padded at init.
        x = jnp.zeros((bp, n_obs), x.dtype).at[:B].set(x)

    grid = (bp // tb,)
    flops = 2 * bp * (n_obs * H + H * H + H * act_p)
    bytes_accessed = 4 * (
        bp * n_obs + n_obs * H + H + H * H + H + H * act_p + act_p + bp * act_p
    )

    out_padded = pl.pallas_call(
        dqn_kernel,
        out_shape=jax.ShapeDtypeStruct((bp, act_p), jnp.float32),
        grid=grid,
        in_specs=[
            pl.BlockSpec((tb, n_obs), lambda i: (i, 0)),   # x: tiled along batch
            pl.BlockSpec((n_obs, H), lambda i: (0, 0)),    # weights/biases: resident
            pl.BlockSpec((1, H), lambda i: (0, 0)),
            pl.BlockSpec((H, H), lambda i: (0, 0)),
            pl.BlockSpec((1, H), lambda i: (0, 0)),
            pl.BlockSpec((H, act_p), lambda i: (0, 0)),
            pl.BlockSpec((1, act_p), lambda i: (0, 0)),
        ],
        out_specs=pl.BlockSpec((tb, act_p), lambda i: (i, 0)),
        compiler_params=pltpu.CompilerParams(
            dimension_semantics=("parallel",),  # shards batch tiles across TCs on v7x
        ),
        cost_estimate=pl.CostEstimate(
            flops=flops, transcendentals=0, bytes_accessed=bytes_accessed
        ),
    )(x, w1, b1, w2, b2, w3p, b3p)

    return out_padded[:B, :n_actions]


def init_params(key, n_observations: int, n_actions: int, hidden_size: int = 64):
    """Deterministic init mimicking PyTorch nn.Linear default (U[-1/sqrt(fan_in), +1/sqrt(fan_in)])."""
    ks = jax.random.split(key, 6)

    def linear(kw, kb, fan_in, fan_out):
        bound = 1.0 / (fan_in ** 0.5)
        w = jax.random.uniform(kw, (fan_in, fan_out), jnp.float32, -bound, bound)
        b = jax.random.uniform(kb, (fan_out,), jnp.float32, -bound, bound)
        return w, b

    w1, b1 = linear(ks[0], ks[1], n_observations, hidden_size)
    w2, b2 = linear(ks[2], ks[3], hidden_size, hidden_size)
    w3, b3 = linear(ks[4], ks[5], hidden_size, n_actions)
    return w1, b1, w2, b2, w3, b3


def _reference(x, w1, b1, w2, b2, w3, b3):
    h = jnp.maximum(x @ w1 + b1, 0.0)
    h = jnp.maximum(h @ w2 + b2, 0.0)
    return h @ w3 + b3


if __name__ == "__main__":
    # MountainCar-v0: observation dim = 2, action space = 3.
    n_observations = 2
    n_actions = 3

    key = jax.random.PRNGKey(0)
    k_params, k_x1, k_x2 = jax.random.split(key, 3)

    raw = init_params(k_params, n_observations, n_actions)
    padded = pad_params(*raw)  # done once, outside the hot path

    # Small inference-style batch (single grid step, padded batch rows).
    x_small = jax.random.normal(k_x1, (4, n_observations), jnp.float32)
    out_small = jax.block_until_ready(
        dqn_forward(x_small, *padded, n_actions=n_actions)
    )
    ref_small = _reference(x_small, *raw)
    assert out_small.shape == (4, n_actions), out_small.shape
    assert jnp.allclose(out_small, ref_small, atol=1e-5, rtol=1e-5), "mismatch (batch=4)"

    # Training-style batch (exercises the batch grid / parallel axis).
    x_big = jax.random.normal(k_x2, (1024, n_observations), jnp.float32)
    out_big = jax.block_until_ready(
        dqn_forward(x_big, *padded, n_actions=n_actions)
    )
    ref_big = _reference(x_big, *raw)
    assert out_big.shape == (1024, n_actions), out_big.shape
    assert jnp.allclose(out_big, ref_big, atol=1e-5, rtol=1e-5), "mismatch (batch=1024)"

    print("KERNEL_OK")
</pallas_src>

<mosaic_0001>
module attributes {stable_mosaic.version = 11 : i64} {
  func.func @dqn_kernel(%arg0: i32, %arg1: memref<8x2xf32, #tpu.memory_space<vmem>>, %arg2: memref<2x64xf32, #tpu.memory_space<vmem>>, %arg3: memref<1x64xf32, #tpu.memory_space<vmem>>, %arg4: memref<64x64xf32, #tpu.memory_space<vmem>>, %arg5: memref<1x64xf32, #tpu.memory_space<vmem>>, %arg6: memref<64x128xf32, #tpu.memory_space<vmem>>, %arg7: memref<1x128xf32, #tpu.memory_space<vmem>>, %arg8: memref<8x128xf32, #tpu.memory_space<vmem>>) attributes {dimension_semantics = [#tpu.dimension_semantics<parallel>], iteration_bounds = array<i64: 1>, scalar_prefetch = 0 : i64, scratch_operands = 0 : i64, tpu.core_type = #tpu.core_type<tc>, window_params = [{transform_indices = @transform_0, window_bounds = array<i64: 8, 2>}, {pipeline_mode = #tpu.pipeline_mode<synchronous>, transform_indices = @transform_1, window_bounds = array<i64: 2, 64>}, {pipeline_mode = #tpu.pipeline_mode<synchronous>, transform_indices = @transform_2, window_bounds = array<i64: 1, 64>}, {pipeline_mode = #tpu.pipeline_mode<synchronous>, transform_indices = @transform_3, window_bounds = array<i64: 64, 64>}, {pipeline_mode = #tpu.pipeline_mode<synchronous>, transform_indices = @transform_4, window_bounds = array<i64: 1, 64>}, {pipeline_mode = #tpu.pipeline_mode<synchronous>, transform_indices = @transform_5, window_bounds = array<i64: 64, 128>}, {pipeline_mode = #tpu.pipeline_mode<synchronous>, transform_indices = @transform_6, window_bounds = array<i64: 1, 128>}, {transform_indices = @transform_7, window_bounds = array<i64: 8, 128>}]} {
    %c0 = arith.constant 0 : index
    %c0_0 = arith.constant 0 : index
    %0 = vector.load %arg1[%c0, %c0_0] : memref<8x2xf32, #tpu.memory_space<vmem>>, vector<8x2xf32>
    %c0_1 = arith.constant 0 : index
    %c0_2 = arith.constant 0 : index
    %1 = vector.load %arg2[%c0_1, %c0_2] : memref<2x64xf32, #tpu.memory_space<vmem>>, vector<2x64xf32>
    %c0_3 = arith.constant 0 : index
    %c0_4 = arith.constant 0 : index
    %2 = vector.load %arg3[%c0_3, %c0_4] : memref<1x64xf32, #tpu.memory_space<vmem>>, vector<1x64xf32>
    %3 = vector.extract_strided_slice %0 {offsets = [0, 0], sizes = [8, 1], strides = [1, 1]} : vector<8x2xf32> to vector<8x1xf32>
    %4 = vector.extract_strided_slice %1 {offsets = [0, 0], sizes = [1, 64], strides = [1, 1]} : vector<2x64xf32> to vector<1x64xf32>
    %5 = vector.broadcast %3 : vector<8x1xf32> to vector<8x64xf32>
    %6 = vector.broadcast %4 : vector<1x64xf32> to vector<8x64xf32>
    %7 = arith.mulf %5, %6 : vector<8x64xf32>
    %8 = vector.broadcast %2 : vector<1x64xf32> to vector<8x64xf32>
    %9 = arith.addf %8, %7 : vector<8x64xf32>
    %10 = vector.extract_strided_slice %0 {offsets = [0, 1], sizes = [8, 1], strides = [1, 1]} : vector<8x2xf32> to vector<8x1xf32>
    %11 = vector.extract_strided_slice %1 {offsets = [1, 0], sizes = [1, 64], strides = [1, 1]} : vector<2x64xf32> to vector<1x64xf32>
    %12 = vector.broadcast %10 : vector<8x1xf32> to vector<8x64xf32>
    %13 = vector.broadcast %11 : vector<1x64xf32> to vector<8x64xf32>
    %14 = arith.mulf %12, %13 : vector<8x64xf32>
    %15 = arith.addf %9, %14 : vector<8x64xf32>
    %cst = arith.constant 0.000000e+00 : f32
    %16 = vector.broadcast %cst : f32 to vector<8x64xf32>
    %17 = arith.maximumf %15, %16 : vector<8x64xf32>
    %c0_5 = arith.constant 0 : index
    %c0_6 = arith.constant 0 : index
    %18 = vector.load %arg4[%c0_5, %c0_6] : memref<64x64xf32, #tpu.memory_space<vmem>>, vector<64x64xf32>
    %cst_7 = arith.constant dense<0.000000e+00> : vector<8x64xf32>
    %19 = tpu.matmul %17, %18, %cst_7 {dimension_numbers = #tpu.dot_dimension_numbers<[1], [0], [0], [1], [0, 0, 1, 1], [], []>} : vector<8x64xf32>, vector<64x64xf32>, vector<8x64xf32> -> vector<8x64xf32>
    %c0_8 = arith.constant 0 : index
    %c0_9 = arith.constant 0 : index
    %20 = vector.load %arg5[%c0_8, %c0_9] : memref<1x64xf32, #tpu.memory_space<vmem>>, vector<1x64xf32>
    %21 = vector.broadcast %20 : vector<1x64xf32> to vector<8x64xf32>
    %22 = arith.addf %19, %21 : vector<8x64xf32>
    %cst_10 = arith.constant 0.000000e+00 : f32
    %23 = vector.broadcast %cst_10 : f32 to vector<8x64xf32>
    %24 = arith.maximumf %22, %23 : vector<8x64xf32>
    %c0_11 = arith.constant 0 : index
    %c0_12 = arith.constant 0 : index
    %25 = vector.load %arg6[%c0_11, %c0_12] : memref<64x128xf32, #tpu.memory_space<vmem>>, vector<64x128xf32>
    %cst_13 = arith.constant dense<0.000000e+00> : vector<8x128xf32>
    %26 = tpu.matmul %24, %25, %cst_13 {dimension_numbers = #tpu.dot_dimension_numbers<[1], [0], [0], [1], [0, 0, 1, 1], [], []>} : vector<8x64xf32>, vector<64x128xf32>, vector<8x128xf32> -> vector<8x128xf32>
    %c0_14 = arith.constant 0 : index
    %c0_15 = arith.constant 0 : index
    %27 = vector.load %arg7[%c0_14, %c0_15] : memref<1x128xf32, #tpu.memory_space<vmem>>, vector<1x128xf32>
    %28 = vector.broadcast %27 : vector<1x128xf32> to vector<8x128xf32>
    %29 = arith.addf %26, %28 : vector<8x128xf32>
    %c0_16 = arith.constant 0 : index
    %c0_17 = arith.constant 0 : index
    %30 = vector.load %arg8[%c0_16, %c0_17] : memref<8x128xf32, #tpu.memory_space<vmem>>, vector<8x128xf32>
    tpu.vector_store %arg8[%c0_16, %c0_17], %29 {strides = array<i32>} : memref<8x128xf32, #tpu.memory_space<vmem>>, vector<8x128xf32>,
    return
  }
  func.func @transform_0(%arg0: i32) -> (i32, i32) {
    %c0_i32 = arith.constant 0 : i32
    %c0_i32_0 = arith.constant 0 : i32
    return %arg0, %c0_i32 : i32, i32
  }
  func.func @transform_1(%arg0: i32) -> (i32, i32) {
    %c0_i32 = arith.constant 0 : i32
    %c0_i32_0 = arith.constant 0 : i32
    %c0_i32_1 = arith.constant 0 : i32
    return %c0_i32, %c0_i32_0 : i32, i32
  }
  func.func @transform_2(%arg0: i32) -> (i32, i32) {
    %c0_i32 = arith.constant 0 : i32
    %c0_i32_0 = arith.constant 0 : i32
    %c0_i32_1 = arith.constant 0 : i32
    return %c0_i32, %c0_i32_0 : i32, i32
  }
  func.func @transform_3(%arg0: i32) -> (i32, i32) {
    %c0_i32 = arith.constant 0 : i32
    %c0_i32_0 = arith.constant 0 : i32
    %c0_i32_1 = arith.constant 0 : i32
    return %c0_i32, %c0_i32_0 : i32, i32
  }
  func.func @transform_4(%arg0: i32) -> (i32, i32) {
    %c0_i32 = arith.constant 0 : i32
    %c0_i32_0 = arith.constant 0 : i32
    %c0_i32_1 = arith.constant 0 : i32
    return %c0_i32, %c0_i32_0 : i32, i32
  }
  func.func @transform_5(%arg0: i32) -> (i32, i32) {
    %c0_i32 = arith.constant 0 : i32
    %c0_i32_0 = arith.constant 0 : i32
    %c0_i32_1 = arith.constant 0 : i32
    return %c0_i32, %c0_i32_0 : i32, i32
  }
  func.func @transform_6(%arg0: i32) -> (i32, i32) {
    %c0_i32 = arith.constant 0 : i32
    %c0_i32_0 = arith.constant 0 : i32
    %c0_i32_1 = arith.constant 0 : i32
    return %c0_i32, %c0_i32_0 : i32, i32
  }
  func.func @transform_7(%arg0: i32) -> (i32, i32) {
    %c0_i32 = arith.constant 0 : i32
    %c0_i32_0 = arith.constant 0 : i32
    return %arg0, %c0_i32 : i32, i32
  }
}

</mosaic_0001>

<llo_original>
// kernel: dqn_forward.1
$region0: #{dqn_forward.1}
  #allocation0 [shape = 'u32[]', space=smem, size = 0x4, offset = 0x4, fixed_abs, tag = 'smem constant byte address 0x4 - core index']
  #allocation1 [shape = 'u32[144,128]{1,0:T(1,128)}', space=vmem, size = 0x12000, scoped, tag = 'internal scratch']
  %s0 = inlined_call_operand.vmem [shape: f32[8,2], index: 0, kind: input, shape index: {}]
  %s1 = inlined_call_operand.vmem [shape: f32[2,64], index: 1, kind: input, shape index: {}]
  %s2 = inlined_call_operand.vmem [shape: f32[1,64], index: 2, kind: input, shape index: {}]
  %s3 = inlined_call_operand.hbm [shape: f32[64,64], index: 3, kind: input, shape index: {}]
  %s4 = inlined_call_operand.vmem [shape: f32[1,64], index: 4, kind: input, shape index: {}]
  %s5 = inlined_call_operand.hbm [shape: f32[64,128], index: 5, kind: input, shape index: {}]
  %s6 = inlined_call_operand.vmem [shape: f32[1,128], index: 6, kind: input, shape index: {}]
  %s7 = inlined_call_operand.vmem [shape: f32[8,128], index: 7, kind: output, shape index: {}]
  %s8 = sld [smem:[#allocation0]]
  $region46: #{dqn_forward.1} parent=0
    _
  %s10 = ssub.s32 1, %s8
  %s11 = scalar_select 0, %s10, %s8
  $region1: #{dqn_forward.1} parent=0
    #allocation2 [shape = 'u8[32768]{0}', space=vmem, size = 0x8000, scoped, tag = 'input window, operand 3, single buffered']
    #allocation3 [shape = 's32[1]{0}', space=sflag, size = 0x4, scoped, tag = 'scoped memory for dqn_forward.1']
    #allocation4 [shape = 'u8[32768]{0}', space=vmem, size = 0x8000, scoped, tag = 'input window, operand 5, single buffered']
    #allocation5 [shape = 's32[1]{0}', space=sflag, size = 0x4, scoped, tag = 'scoped memory for dqn_forward.1']
    %12 = vsyncpa [#allocation3], 0
    %13 = vsyncpa [#allocation5], 0
    // Predicated region
    $region2: #{dqn_forward.1} parent=1 // pred_check
      _
    $region3: #{dqn_forward.1} parent=1 // pred_check_branch
      %15 = sbr.rel (0) target = $region5
    $region4: #{dqn_forward.1} parent=1 // pred_region
      _
    $region5: #{dqn_forward.1} parent=1 // pred_fallthru
      _
    // Predicated region
    $region6: #{dqn_forward.1} parent=1 // pred_check
      _
    $region7: #{dqn_forward.1} parent=1 // pred_check_branch
      %17 = sbr.rel (0) target = $region9
    $region8: #{dqn_forward.1} parent=1 // pred_region
      _
    $region9: #{dqn_forward.1} parent=1 // pred_fallthru
      _
    // Predicated region
    $region10: #{dqn_forward.1} parent=1 // pred_check
      _
    $region11: #{dqn_forward.1} parent=1 // pred_check_branch
      %19 = sbr.rel (0) target = $region13
    $region12: #{dqn_forward.1} parent=1 // pred_region
      _
    $region13: #{dqn_forward.1} parent=1 // pred_fallthru
      _
    // Predicated region
    $region14: #{dqn_forward.1} parent=1 // pred_check
      _
    $region15: #{dqn_forward.1} parent=1 // pred_check_branch
      %21 = sbr.rel (0) target = $region17
    $region16: #{dqn_forward.1} parent=1 // pred_region
      %s23 = ssub.s32 1024, 1024
      %24 = vsyncadd [#allocation3], %s23
      %s25 = sshll.u32 [#allocation2], 4
      %s26 = int_to_ptr.vmem [resolvable:$true] %s25
      %31 = dma.hbm_to_vmem [thread:$0]  %s3, 1024, %s26, [#allocation3], 128, 128, 8
    $region17: #{dqn_forward.1} parent=1 // pred_fallthru
      _
    // Predicated region
    $region18: #{dqn_forward.1} parent=1 // pred_check
      _
    $region19: #{dqn_forward.1} parent=1 // pred_check_branch
      %33 = sbr.rel (0) target = $region21
    $region20: #{dqn_forward.1} parent=1 // pred_region
      _
    $region21: #{dqn_forward.1} parent=1 // pred_fallthru
      _
    // Predicated region
    $region22: #{dqn_forward.1} parent=1 // pred_check
      _
    $region23: #{dqn_forward.1} parent=1 // pred_check_branch
      %35 = sbr.rel (0) target = $region25
    $region24: #{dqn_forward.1} parent=1 // pred_region
      %s37 = ssub.s32 1024, 1024
      %38 = vsyncadd [#allocation5], %s37
      %s39 = sshll.u32 [#allocation4], 4
      %s40 = int_to_ptr.vmem [resolvable:$true] %s39
      %45 = dma.hbm_to_vmem [thread:$0]  %s5, 1024, %s40, [#allocation5], 128, 128, 8
    $region25: #{dqn_forward.1} parent=1 // pred_fallthru
      _
    // Predicated region
    $region26: #{dqn_forward.1} parent=1 // pred_check
      _
    $region27: #{dqn_forward.1} parent=1 // pred_check_branch
      %47 = sbr.rel (0) target = $region29
    $region28: #{dqn_forward.1} parent=1 // pred_region
      _
    $region29: #{dqn_forward.1} parent=1 // pred_fallthru
      _
    // Predicated region
    $region30: #{dqn_forward.1} parent=1 // pred_check
      _
    $region31: #{dqn_forward.1} parent=1 // pred_check_branch
      %49 = sbr.rel (0) target = $region33
    $region32: #{dqn_forward.1} parent=1 // pred_region
      %50 = dma.done [#allocation3], 1024
    $region33: #{dqn_forward.1} parent=1 // pred_fallthru
      _
    // Predicated region
    $region34: #{dqn_forward.1} parent=1 // pred_check
      _
    $region35: #{dqn_forward.1} parent=1 // pred_check_branch
      %52 = sbr.rel (0) target = $region37
    $region36: #{dqn_forward.1} parent=1 // pred_region
      %53 = dma.done [#allocation5], 1024
    $region37: #{dqn_forward.1} parent=1 // pred_fallthru
      _
    %v54 = vld [vmem:[%s0] sm:$0xff]
    %v55 = vld [vmem:[%s1] sm:$0x3]
    %v56 = vld [vmem:[%s2] sm:$0x1]
    %58 = vset.pattern.permute.xlu0 0
    %59 = vperm.xlu0 %58, %v54
    %v60 = vpop.permute.xlu0 %59
    %v62 = vlaneseq
    %v63 = vshrl.u32 %v62, 7
    %v64 = vsub.s32 0, %v63
    %v65 = vrot.slane %v55, %v64
    %v66 = vmul.f32 %v60, %v65
    %v68 = vlaneseq
    %v69 = vshrl.u32 %v68, 7
    %v70 = vsub.s32 0, %v69
    %v71 = vrot.slane %v56, %v70
    %v73 = vadd.f32 %v71, %v66
    %74 = vset.pattern.permute.xlu0 1
    %75 = vperm.xlu0 %74, %v54
    %v76 = vpop.permute.xlu0 %75
    %v78 = vlaneseq
    %v79 = vshrl.u32 %v78, 7
    %v80 = vsub.s32 1, %v79
    %v81 = vrot.slane %v55, %v80
    %v82 = vmul.f32 %v76, %v81
    %v83 = vadd.f32 %v73, %v82
    %v84 = vmax.f32 %v83, 0.0
    %v85 = vld [vmem:[#allocation2] sm:$0xff]
    %v86 = vld [vmem:[#allocation2 + $0x8] sm:$0xff]
    %v87 = vld [vmem:[#allocation2 + $0x10] sm:$0xff]
    %v88 = vld [vmem:[#allocation2 + $0x18] sm:$0xff]
    %v89 = vld [vmem:[#allocation2 + $0x20] sm:$0xff]
    %v90 = vld [vmem:[#allocation2 + $0x28] sm:$0xff]
    %v91 = vld [vmem:[#allocation2 + $0x30] sm:$0xff]
    %v92 = vld [vmem:[#allocation2 + $0x38] sm:$0xff]
    %v93 = vld [vmem:[%s4] sm:$0x1]
    %v95 = vlaneseq
    %v96 = vshrl.u32 %v95, 7
    %v97 = vsub.s32 0, %v96
    %v98 = vrot.slane %v93, %v97
    %vm100 = vcmask 523264
    %v102 = vsel %vm100, %v84, 0
    %104 = vmatprep.subr.mxu0 0.0
    %105 = vmatpush1.msra.mxu0 %v85
    %106 = vmatprep.subr.mxu0 0.0
    %107 = vmatpush1.msra.mxu0 %v86
    %108 = vmatprep.subr.mxu0 0.0
    %109 = vmatpush1.msra.mxu0 %v87
    %110 = vmatprep.subr.mxu0 0.0
    %111 = vmatpush1.msra.mxu0 %v88
    %112 = vmatprep.subr.mxu0 0.0
    %113 = vmatpush1.msra.mxu0 %v89
    %114 = vmatprep.subr.mxu0 0.0
    %115 = vmatpush1.msra.mxu0 %v90
    %116 = vmatprep.subr.mxu0 0.0
    %117 = vmatpush1.msra.mxu0 %v91
    %118 = vmatprep.subr.mxu0 0.0
    %119 = vmatpush1.msra.mxu0 %v92
    %120 = vmatprep.subr.mxu0 0.0
    %121 = vmatpush1.msra.mxu0 0.0
    %122 = vmatprep.subr.mxu0 0.0
    %123 = vmatpush1.msra.mxu0 0.0
    %124 = vmatprep.subr.mxu0 0.0
    %125 = vmatpush1.msra.mxu0 0.0
    %126 = vmatprep.subr.mxu0 0.0
    %127 = vmatpush1.msra.mxu0 0.0
    %128 = vmatprep.subr.mxu0 0.0
    %129 = vmatpush1.msra.mxu0 0.0
    %130 = vmatprep.subr.mxu0 0.0
    %131 = vmatpush1.msra.mxu0 0.0
    %132 = vmatprep.subr.mxu0 0.0
    %133 = vmatpush1.msra.mxu0 0.0
    %134 = vmatprep.subr.mxu0 0.0
    %135 = vmatpush1.msra.mxu0 0.0
    %136 = vmatprep.subr.mxu0 0.0
    %137 = vmatpush1.msra.mxu0 0.0
    %138 = vmatprep.subr.mxu0 0.0
    %139 = vmatpush1.msra.mxu0 0.0
    %140 = vmatprep.subr.mxu0 0.0
    %141 = vmatpush1.msra.mxu0 0.0
    %142 = vmatprep.subr.mxu0 0.0
    %143 = vmatpush1.msra.mxu0 0.0
    %144 = vmatprep.subr.mxu0 0.0
    %145 = vmatpush1.msra.mxu0 0.0
    %146 = vmatprep.subr.mxu0 0.0
    %147 = vmatpush1.msra.mxu0 0.0
    %148 = vmatprep.subr.mxu0 0.0
    %149 = vmatpush1.msra.mxu0 0.0
    %150 = vmatprep.subr.mxu0 0.0
    %151 = vmatpush1.msra.mxu0 0.0
    %152 = vmatprep.subr.mxu0 0.0
    %153 = vmatpush1.msra.mxu0 0.0
    %154 = vmatprep.subr.mxu0 0.0
    %155 = vmatpush1.msra.mxu0 0.0
    %156 = vmatprep.subr.mxu0 0.0
    %157 = vmatpush1.msra.mxu0 0.0
    %158 = vmatprep.subr.mxu0 0.0
    %159 = vmatpush1.msra.mxu0 0.0
    %160 = vmatprep.subr.mxu0 0.0
    %161 = vmatpush1.msra.mxu0 0.0
    %162 = vmatprep.subr.mxu0 0.0
    %163 = vmatpush1.msra.mxu0 0.0
    %164 = vmatprep.subr.mxu0 0.0
    %165 = vmatpush1.msra.mxu0 0.0
    %166 = vmatprep.subr.mxu0 0.0
    %167 = vmatpush1.msra.mxu0 0.0
    %168 = vmatprep.mubr.f32.mxu0 0.0
    %169 = vmatmul.mubr.f32.gmra.mrb[0].mxu0 %v102
    %v170 = vpop.f32.mrb[0].mxu0
    %v171 = vadd.f32 %v98, %v170
    %v172 = vpop.f32.mrb[0].mxu0
    %173 = vdwg.mxu0
    %v174 = vmax.f32 %v171, 0.0
    %v175 = vld [vmem:[#allocation4] sm:$0xff]
    %v176 = vld [vmem:[#allocation4 + $0x8] sm:$0xff]
    %v177 = vld [vmem:[#allocation4 + $0x10] sm:$0xff]
    %v178 = vld [vmem:[#allocation4 + $0x18] sm:$0xff]
    %v179 = vld [vmem:[#allocation4 + $0x20] sm:$0xff]
    %v180 = vld [vmem:[#allocation4 + $0x28] sm:$0xff]
    %v181 = vld [vmem:[#allocation4 + $0x30] sm:$0xff]
    %v182 = vld [vmem:[#allocation4 + $0x38] sm:$0xff]
    %v183 = vld [vmem:[%s6] sm:$0x1]
    %v185 = vlaneseq
    %v186 = vshrl.u32 %v185, 7
    %v187 = vsub.s32 0, %v186
    %v188 = vrot.slane %v183, %v187
    %v191 = vsel %vm100, %v174, 0
    %193 = vmatprep.subr.mxu0 0.0
    %194 = vmatpush1.msra.mxu0 %v175
    %195 = vmatprep.subr.mxu0 0.0
    %196 = vmatpush1.msra.mxu0 %v176
    %197 = vmatprep.subr.mxu0 0.0
    %198 = vmatpush1.msra.mxu0 %v177
    %199 = vmatprep.subr.mxu0 0.0
    %200 = vmatpush1.msra.mxu0 %v178
    %201 = vmatprep.subr.mxu0 0.0
    %202 = vmatpush1.msra.mxu0 %v179
    %203 = vmatprep.subr.mxu0 0.0
    %204 = vmatpush1.msra.mxu0 %v180
    %205 = vmatprep.subr.mxu0 0.0
    %206 = vmatpush1.msra.mxu0 %v181
    %207 = vmatprep.subr.mxu0 0.0
    %208 = vmatpush1.msra.mxu0 %v182
    %209 = vmatprep.subr.mxu0 0.0
    %210 = vmatpush1.msra.mxu0 0.0
    %211 = vmatprep.subr.mxu0 0.0
    %212 = vmatpush1.msra.mxu0 0.0
    %213 = vmatprep.subr.mxu0 0.0
    %214 = vmatpush1.msra.mxu0 0.0
    %215 = vmatprep.subr.mxu0 0.0
    %216 = vmatpush1.msra.mxu0 0.0
    %217 = vmatprep.subr.mxu0 0.0
    %218 = vmatpush1.msra.mxu0 0.0
    %219 = vmatprep.subr.mxu0 0.0
    %220 = vmatpush1.msra.mxu0 0.0
    %221 = vmatprep.subr.mxu0 0.0
    %222 = vmatpush1.msra.mxu0 0.0
    %223 = vmatprep.subr.mxu0 0.0
    %224 = vmatpush1.msra.mxu0 0.0
    %225 = vmatprep.subr.mxu0 0.0
    %226 = vmatpush1.msra.mxu0 0.0
    %227 = vmatprep.subr.mxu0 0.0
    %228 = vmatpush1.msra.mxu0 0.0
    %229 = vmatprep.subr.mxu0 0.0
    %230 = vmatpush1.msra.mxu0 0.0
    %231 = vmatprep.subr.mxu0 0.0
    %232 = vmatpush1.msra.mxu0 0.0
    %233 = vmatprep.subr.mxu0 0.0
    %234 = vmatpush1.msra.mxu0 0.0
    %235 = vmatprep.subr.mxu0 0.0
    %236 = vmatpush1.msra.mxu0 0.0
    %237 = vmatprep.subr.mxu0 0.0
    %238 = vmatpush1.msra.mxu0 0.0
    %239 = vmatprep.subr.mxu0 0.0
    %240 = vmatpush1.msra.mxu0 0.0
    %241 = vmatprep.subr.mxu0 0.0
    %242 = vmatpush1.msra.mxu0 0.0
    %243 = vmatprep.subr.mxu0 0.0
    %244 = vmatpush1.msra.mxu0 0.0
    %245 = vmatprep.subr.mxu0 0.0
    %246 = vmatpush1.msra.mxu0 0.0
    %247 = vmatprep.subr.mxu0 0.0
    %248 = vmatpush1.msra.mxu0 0.0
    %249 = vmatprep.subr.mxu0 0.0
    %250 = vmatpush1.msra.mxu0 0.0
    %251 = vmatprep.subr.mxu0 0.0
    %252 = vmatpush1.msra.mxu0 0.0
    %253 = vmatprep.subr.mxu0 0.0
    %254 = vmatpush1.msra.mxu0 0.0
    %255 = vmatprep.subr.mxu0 0.0
    %256 = vmatpush1.msra.mxu0 0.0
    %257 = vmatprep.mubr.f32.mxu0 0.0
    %258 = vmatmul.mubr.f32.gmra.mrb[0].mxu0 %v191
    %v259 = vpop.f32.mrb[0].mxu0
    %v260 = vadd.f32 %v188, %v259
    %v261 = vpop.f32.mrb[0].mxu0
    %262 = vdwg.mxu0
    %263 = vst [vmem:[%s7] sm:$0xff] %v260
    // Predicated region
    $region38: #{dqn_forward.1} parent=1 // pred_check
      _
    $region39: #{dqn_forward.1} parent=1 // pred_check_branch
      %265 = sbr.rel (0) target = $region41
    $region40: #{dqn_forward.1} parent=1 // pred_region
      _
    $region41: #{dqn_forward.1} parent=1 // pred_fallthru
      _
    // Predicated region
    $region42: #{dqn_forward.1} parent=1 // pred_check
      _
    $region43: #{dqn_forward.1} parent=1 // pred_check_branch
      %267 = sbr.rel (0) target = $region45
    $region44: #{dqn_forward.1} parent=1 // pred_region
      _
    $region45: #{dqn_forward.1} parent=1 // pred_fallthru
      _
    %268 = vsyncpa [#allocation3], 1
    %269 = vsyncpa [#allocation5], 1

</llo_original>
